<compile_context>
chip_gen: v6e
topology: v6e:2x2x1
jax: 0.10.0
libtpu: 0.0.40
codegen_flags: <defaults>
</compile_context>

<pallas_src>
import functools

import jax
import jax.numpy as jnp
from jax.experimental import pallas as pl
from jax.experimental.pallas import tpu as pltpu

LANE = 128          # TPU lane width
BF16_SUBLANE = 16   # bf16 packs 16 rows per vreg sublane group


def _round_up(x, m):
    return ((x + m - 1) // m) * m


def _mlp_kernel(x_ref, w1_ref, b1_ref, w2_ref, b2_ref, w3_ref, b3_ref, o_ref):
    # Three MXU matmuls (bf16 operands, f32 accumulation) + f32 VPU bias-add / ReLU.
    x = x_ref[...]                                                        # bf16 (TILE_B, in)
    h = jnp.dot(x, w1_ref[...], preferred_element_type=jnp.float32) + b1_ref[...]
    h = jnp.maximum(h, 0.0).astype(jnp.bfloat16)
    h = jnp.dot(h, w2_ref[...], preferred_element_type=jnp.float32) + b2_ref[...]
    h = jnp.maximum(h, 0.0).astype(jnp.bfloat16)
    out = jnp.dot(h, w3_ref[...], preferred_element_type=jnp.float32) + b3_ref[...]
    o_ref[...] = out                                                      # f32, lane-dense


@functools.partial(jax.jit, static_argnames=("tile_b",))
def mlp_forward(state, w1, b1, w2, b2, w3, b3, tile_b=128):
    """Forward pass matching PyTorch: relu(x@W1+b1) -> relu(@W2+b2) -> @W3+b3.

    Params are given in (in_dim, out_dim) layout, biases as (1, out_dim), all f32.
    Padding / casting happens here; the kernel only sees lane-dense bf16/f32 tiles.
    """
    B, in_dim = state.shape
    h1, h2, n_act = w1.shape[1], w2.shape[1], w3.shape[1]

    # Lane-dense padded widths (zero padding preserves the math exactly).
    h1p = _round_up(h1, LANE)
    h2p = _round_up(h2, LANE)
    outp = _round_up(n_act, LANE)

    # Batch tiling: pad B to bf16-friendly multiple, tile by tile_b when large enough.
    bp = _round_up(B, BF16_SUBLANE)
    if bp > tile_b:
        bp = _round_up(bp, tile_b)
        tb = tile_b
    else:
        tb = bp
    grid = (bp // tb,)

    # Pad + cast (done once per call by XLA, outside the hot kernel loop).
    x_p = jnp.zeros((bp, in_dim), jnp.bfloat16).at[:B, :].set(state.astype(jnp.bfloat16))
    w1_p = jnp.zeros((in_dim, h1p), jnp.bfloat16).at[:, :h1].set(w1.astype(jnp.bfloat16))
    w2_p = jnp.zeros((h1p, h2p), jnp.bfloat16).at[:h1, :h2].set(w2.astype(jnp.bfloat16))
    w3_p = jnp.zeros((h2p, outp), jnp.bfloat16).at[:h2, :n_act].set(w3.astype(jnp.bfloat16))
    b1_p = jnp.zeros((1, h1p), jnp.float32).at[:, :h1].set(b1)
    b2_p = jnp.zeros((1, h2p), jnp.float32).at[:, :h2].set(b2)
    b3_p = jnp.zeros((1, outp), jnp.float32).at[:, :n_act].set(b3)

    flops = 2 * bp * (in_dim * h1p + h1p * h2p + h2p * outp)
    bytes_accessed = (
        x_p.size * 2 + w1_p.size * 2 + w2_p.size * 2 + w3_p.size * 2
        + b1_p.size * 4 + b2_p.size * 4 + b3_p.size * 4
        + bp * outp * 4
    )

    out_padded = pl.pallas_call(
        _mlp_kernel,
        out_shape=jax.ShapeDtypeStruct((bp, outp), jnp.float32),
        grid=grid,
        in_specs=[
            pl.BlockSpec((tb, in_dim), lambda i: (i, 0)),   # state tile: pipelined over grid
            pl.BlockSpec((in_dim, h1p), lambda i: (0, 0)),  # weights/biases stay VMEM-resident
            pl.BlockSpec((1, h1p), lambda i: (0, 0)),
            pl.BlockSpec((h1p, h2p), lambda i: (0, 0)),
            pl.BlockSpec((1, h2p), lambda i: (0, 0)),
            pl.BlockSpec((h2p, outp), lambda i: (0, 0)),
            pl.BlockSpec((1, outp), lambda i: (0, 0)),
        ],
        out_specs=pl.BlockSpec((tb, outp), lambda i: (i, 0)),
        compiler_params=pltpu.CompilerParams(
            dimension_semantics=("parallel",),              # megacore sharding on v7x
        ),
        cost_estimate=pl.CostEstimate(
            flops=flops, transcendentals=0, bytes_accessed=bytes_accessed
        ),
    )(x_p, w1_p, b1_p, w2_p, b2_p, w3_p, b3_p)

    return out_padded[:B, :n_act]


def init_params(key, input_dims, fc1_dims, fc2_dims, n_actions):
    """Deterministic init mirroring nn.Linear's U(-1/sqrt(in), 1/sqrt(in)); (in, out) layout."""
    def linear(k, fan_in, fan_out):
        kw, kb = jax.random.split(k)
        bound = 1.0 / jnp.sqrt(fan_in)
        w = jax.random.uniform(kw, (fan_in, fan_out), jnp.float32, -bound, bound)
        b = jax.random.uniform(kb, (1, fan_out), jnp.float32, -bound, bound)
        return w, b

    k1, k2, k3 = jax.random.split(key, 3)
    w1, b1 = linear(k1, input_dims, fc1_dims)
    w2, b2 = linear(k2, fc1_dims, fc2_dims)
    w3, b3 = linear(k3, fc2_dims, n_actions)
    return w1, b1, w2, b2, w3, b3


def _ref_forward(state, w1, b1, w2, b2, w3, b3):
    h = jnp.maximum(state @ w1 + b1, 0.0)
    h = jnp.maximum(h @ w2 + b2, 0.0)
    return h @ w3 + b3


if __name__ == "__main__":
    # Small shapes consistent with Model(lr, input_dims, fc1_dims, fc2_dims, n_actions).
    input_dims, fc1_dims, fc2_dims, n_actions = 16, 64, 64, 8

    key = jax.random.PRNGKey(0)
    k_x, k_p, k_x2 = jax.random.split(key, 3)
    params = init_params(k_p, input_dims, fc1_dims, fc2_dims, n_actions)

    # Case 1: tiny batch (single grid point, padded internally).
    B = 8
    state = jax.random.normal(k_x, (B, input_dims), jnp.float32)
    actions = mlp_forward(state, *params)
    jax.block_until_ready(actions)
    ref = _ref_forward(state, *params)
    assert actions.shape == (B, n_actions)
    # bf16 matmul operands -> loosened tolerance vs. the f32 reference.
    assert jnp.allclose(actions, ref, atol=5e-2, rtol=5e-2)

    # Case 2: larger batch exercising the multi-tile batch grid (pipelined, weight-resident).
    B2 = 256
    state2 = jax.random.normal(k_x2, (B2, input_dims), jnp.float32)
    actions2 = mlp_forward(state2, *params)
    jax.block_until_ready(actions2)
    ref2 = _ref_forward(state2, *params)
    assert actions2.shape == (B2, n_actions)
    assert jnp.allclose(actions2, ref2, atol=5e-2, rtol=5e-2)

    print("KERNEL_OK")
</pallas_src>

<mosaic_0001>
module attributes {stable_mosaic.version = 11 : i64} {
  func.func @_mlp_kernel(%arg0: i32, %arg1: memref<16x16xbf16, #tpu.memory_space<vmem>>, %arg2: memref<16x128xbf16, #tpu.memory_space<vmem>>, %arg3: memref<1x128xf32, #tpu.memory_space<vmem>>, %arg4: memref<128x128xbf16, #tpu.memory_space<vmem>>, %arg5: memref<1x128xf32, #tpu.memory_space<vmem>>, %arg6: memref<128x128xbf16, #tpu.memory_space<vmem>>, %arg7: memref<1x128xf32, #tpu.memory_space<vmem>>, %arg8: memref<16x128xf32, #tpu.memory_space<vmem>>) attributes {dimension_semantics = [#tpu.dimension_semantics<parallel>], iteration_bounds = array<i64: 1>, scalar_prefetch = 0 : i64, scratch_operands = 0 : i64, tpu.core_type = #tpu.core_type<tc>, window_params = [{transform_indices = @transform_0, window_bounds = array<i64: 16, 16>}, {pipeline_mode = #tpu.pipeline_mode<synchronous>, transform_indices = @transform_1, window_bounds = array<i64: 16, 128>}, {pipeline_mode = #tpu.pipeline_mode<synchronous>, transform_indices = @transform_2, window_bounds = array<i64: 1, 128>}, {pipeline_mode = #tpu.pipeline_mode<synchronous>, transform_indices = @transform_3, window_bounds = array<i64: 128, 128>}, {pipeline_mode = #tpu.pipeline_mode<synchronous>, transform_indices = @transform_4, window_bounds = array<i64: 1, 128>}, {pipeline_mode = #tpu.pipeline_mode<synchronous>, transform_indices = @transform_5, window_bounds = array<i64: 128, 128>}, {pipeline_mode = #tpu.pipeline_mode<synchronous>, transform_indices = @transform_6, window_bounds = array<i64: 1, 128>}, {transform_indices = @transform_7, window_bounds = array<i64: 16, 128>}]} {
    %c0 = arith.constant 0 : index
    %c0_0 = arith.constant 0 : index
    %0 = vector.load %arg1[%c0, %c0_0] : memref<16x16xbf16, #tpu.memory_space<vmem>>, vector<16x16xbf16>
    %c0_1 = arith.constant 0 : index
    %c0_2 = arith.constant 0 : index
    %1 = vector.load %arg2[%c0_1, %c0_2] : memref<16x128xbf16, #tpu.memory_space<vmem>>, vector<16x128xbf16>
    %cst = arith.constant dense<0.000000e+00> : vector<16x128xf32>
    %2 = tpu.matmul %0, %1, %cst {dimension_numbers = #tpu.dot_dimension_numbers<[1], [0], [0], [1], [0, 0, 1, 1], [], []>} : vector<16x16xbf16>, vector<16x128xbf16>, vector<16x128xf32> -> vector<16x128xf32>
    %c0_3 = arith.constant 0 : index
    %c0_4 = arith.constant 0 : index
    %3 = vector.load %arg3[%c0_3, %c0_4] : memref<1x128xf32, #tpu.memory_space<vmem>>, vector<1x128xf32>
    %4 = vector.broadcast %3 : vector<1x128xf32> to vector<16x128xf32>
    %5 = arith.addf %2, %4 : vector<16x128xf32>
    %cst_5 = arith.constant 0.000000e+00 : f32
    %6 = vector.broadcast %cst_5 : f32 to vector<16x128xf32>
    %7 = arith.maximumf %5, %6 : vector<16x128xf32>
    %8 = arith.truncf %7 : vector<16x128xf32> to vector<16x128xbf16>
    %c0_6 = arith.constant 0 : index
    %c0_7 = arith.constant 0 : index
    %9 = vector.load %arg4[%c0_6, %c0_7] : memref<128x128xbf16, #tpu.memory_space<vmem>>, vector<128x128xbf16>
    %cst_8 = arith.constant dense<0.000000e+00> : vector<16x128xf32>
    %10 = tpu.matmul %8, %9, %cst_8 {dimension_numbers = #tpu.dot_dimension_numbers<[1], [0], [0], [1], [0, 0, 1, 1], [], []>} : vector<16x128xbf16>, vector<128x128xbf16>, vector<16x128xf32> -> vector<16x128xf32>
    %c0_9 = arith.constant 0 : index
    %c0_10 = arith.constant 0 : index
    %11 = vector.load %arg5[%c0_9, %c0_10] : memref<1x128xf32, #tpu.memory_space<vmem>>, vector<1x128xf32>
    %12 = vector.broadcast %11 : vector<1x128xf32> to vector<16x128xf32>
    %13 = arith.addf %10, %12 : vector<16x128xf32>
    %cst_11 = arith.constant 0.000000e+00 : f32
    %14 = vector.broadcast %cst_11 : f32 to vector<16x128xf32>
    %15 = arith.maximumf %13, %14 : vector<16x128xf32>
    %16 = arith.truncf %15 : vector<16x128xf32> to vector<16x128xbf16>
    %c0_12 = arith.constant 0 : index
    %c0_13 = arith.constant 0 : index
    %17 = vector.load %arg6[%c0_12, %c0_13] : memref<128x128xbf16, #tpu.memory_space<vmem>>, vector<128x128xbf16>
    %cst_14 = arith.constant dense<0.000000e+00> : vector<16x128xf32>
    %18 = tpu.matmul %16, %17, %cst_14 {dimension_numbers = #tpu.dot_dimension_numbers<[1], [0], [0], [1], [0, 0, 1, 1], [], []>} : vector<16x128xbf16>, vector<128x128xbf16>, vector<16x128xf32> -> vector<16x128xf32>
    %c0_15 = arith.constant 0 : index
    %c0_16 = arith.constant 0 : index
    %19 = vector.load %arg7[%c0_15, %c0_16] : memref<1x128xf32, #tpu.memory_space<vmem>>, vector<1x128xf32>
    %20 = vector.broadcast %19 : vector<1x128xf32> to vector<16x128xf32>
    %21 = arith.addf %18, %20 : vector<16x128xf32>
    %c0_17 = arith.constant 0 : index
    %c0_18 = arith.constant 0 : index
    %22 = vector.load %arg8[%c0_17, %c0_18] : memref<16x128xf32, #tpu.memory_space<vmem>>, vector<16x128xf32>
    tpu.vector_store %arg8[%c0_17, %c0_18], %21 {strides = array<i32>} : memref<16x128xf32, #tpu.memory_space<vmem>>, vector<16x128xf32>,
    return
  }
  func.func @transform_0(%arg0: i32) -> (i32, i32) {
    %c0_i32 = arith.constant 0 : i32
    %c0_i32_0 = arith.constant 0 : i32
    return %arg0, %c0_i32 : i32, i32
  }
  func.func @transform_1(%arg0: i32) -> (i32, i32) {
    %c0_i32 = arith.constant 0 : i32
    %c0_i32_0 = arith.constant 0 : i32
    %c0_i32_1 = arith.constant 0 : i32
    return %c0_i32, %c0_i32_0 : i32, i32
  }
  func.func @transform_2(%arg0: i32) -> (i32, i32) {
    %c0_i32 = arith.constant 0 : i32
    %c0_i32_0 = arith.constant 0 : i32
    %c0_i32_1 = arith.constant 0 : i32
    return %c0_i32, %c0_i32_0 : i32, i32
  }
  func.func @transform_3(%arg0: i32) -> (i32, i32) {
    %c0_i32 = arith.constant 0 : i32
    %c0_i32_0 = arith.constant 0 : i32
    %c0_i32_1 = arith.constant 0 : i32
    return %c0_i32, %c0_i32_0 : i32, i32
  }
  func.func @transform_4(%arg0: i32) -> (i32, i32) {
    %c0_i32 = arith.constant 0 : i32
    %c0_i32_0 = arith.constant 0 : i32
    %c0_i32_1 = arith.constant 0 : i32
    return %c0_i32, %c0_i32_0 : i32, i32
  }
  func.func @transform_5(%arg0: i32) -> (i32, i32) {
    %c0_i32 = arith.constant 0 : i32
    %c0_i32_0 = arith.constant 0 : i32
    %c0_i32_1 = arith.constant 0 : i32
    return %c0_i32, %c0_i32_0 : i32, i32
  }
  func.func @transform_6(%arg0: i32) -> (i32, i32) {
    %c0_i32 = arith.constant 0 : i32
    %c0_i32_0 = arith.constant 0 : i32
    %c0_i32_1 = arith.constant 0 : i32
    return %c0_i32, %c0_i32_0 : i32, i32
  }
  func.func @transform_7(%arg0: i32) -> (i32, i32) {
    %c0_i32 = arith.constant 0 : i32
    %c0_i32_0 = arith.constant 0 : i32
    return %arg0, %c0_i32 : i32, i32
  }
}

</mosaic_0001>

<llo_original>
// kernel: mlp_forward.1
$region0: #{mlp_forward.1}
  #allocation0 [shape = 'u32[]', space=smem, size = 0x4, offset = 0x4, fixed_abs, tag = 'smem constant byte address 0x4 - core index']
  #allocation1 [shape = 'u32[144,128]{1,0:T(1,128)}', space=vmem, size = 0x12000, scoped, tag = 'internal scratch']
  %s0 = inlined_call_operand.vmem [shape: bf16[16,16], index: 0, kind: input, shape index: {}]
  %s1 = inlined_call_operand.vmem [shape: bf16[16,128], index: 1, kind: input, shape index: {}]
  %s2 = inlined_call_operand.vmem [shape: f32[1,128], index: 2, kind: input, shape index: {}]
  %s3 = inlined_call_operand.vmem [shape: bf16[128,128], index: 3, kind: input, shape index: {}]
  %s4 = inlined_call_operand.vmem [shape: f32[1,128], index: 4, kind: input, shape index: {}]
  %s5 = inlined_call_operand.vmem [shape: bf16[128,128], index: 5, kind: input, shape index: {}]
  %s6 = inlined_call_operand.vmem [shape: f32[1,128], index: 6, kind: input, shape index: {}]
  %s7 = inlined_call_operand.vmem [shape: f32[16,128], index: 7, kind: output, shape index: {}]
  %s8 = sld [smem:[#allocation0]]
  $region38: #{mlp_forward.1} parent=0
    _
  %s10 = ssub.s32 1, %s8
  %s11 = scalar_select 0, %s10, %s8
  // Predicated region
  $region2: #{mlp_forward.1} parent=0 // pred_check
    _
  $region3: #{mlp_forward.1} parent=0 // pred_check_branch
    %13 = sbr.rel (0) target = $region5
  $region4: #{mlp_forward.1} parent=0 // pred_region
    _
  $region5: #{mlp_forward.1} parent=0 // pred_fallthru
    _
  // Predicated region
  $region6: #{mlp_forward.1} parent=0 // pred_check
    _
  $region7: #{mlp_forward.1} parent=0 // pred_check_branch
    %15 = sbr.rel (0) target = $region9
  $region8: #{mlp_forward.1} parent=0 // pred_region
    _
  $region9: #{mlp_forward.1} parent=0 // pred_fallthru
    _
  // Predicated region
  $region10: #{mlp_forward.1} parent=0 // pred_check
    _
  $region11: #{mlp_forward.1} parent=0 // pred_check_branch
    %17 = sbr.rel (0) target = $region13
  $region12: #{mlp_forward.1} parent=0 // pred_region
    _
  $region13: #{mlp_forward.1} parent=0 // pred_fallthru
    _
  // Predicated region
  $region14: #{mlp_forward.1} parent=0 // pred_check
    _
  $region15: #{mlp_forward.1} parent=0 // pred_check_branch
    %19 = sbr.rel (0) target = $region17
  $region16: #{mlp_forward.1} parent=0 // pred_region
    _
  $region17: #{mlp_forward.1} parent=0 // pred_fallthru
    _
  // Predicated region
  $region18: #{mlp_forward.1} parent=0 // pred_check
    _
  $region19: #{mlp_forward.1} parent=0 // pred_check_branch
    %21 = sbr.rel (0) target = $region21
  $region20: #{mlp_forward.1} parent=0 // pred_region
    _
  $region21: #{mlp_forward.1} parent=0 // pred_fallthru
    _
  // Predicated region
  $region22: #{mlp_forward.1} parent=0 // pred_check
    _
  $region23: #{mlp_forward.1} parent=0 // pred_check_branch
    %23 = sbr.rel (0) target = $region25
  $region24: #{mlp_forward.1} parent=0 // pred_region
    _
  $region25: #{mlp_forward.1} parent=0 // pred_fallthru
    _
  // Predicated region
  $region26: #{mlp_forward.1} parent=0 // pred_check
    _
  $region27: #{mlp_forward.1} parent=0 // pred_check_branch
    %25 = sbr.rel (0) target = $region29
  $region28: #{mlp_forward.1} parent=0 // pred_region
    _
  $region29: #{mlp_forward.1} parent=0 // pred_fallthru
    _
  %v27 = vld [vmem:[%s0] sm:$0xf]
  %v28 = vld [vmem:[%s0 + $0x4] sm:$0xf]
  %v29 = vld [vmem:[%s1] sm:$0xf]
  %v30 = vld [vmem:[%s1 + $0x4] sm:$0xf]
  %v31 = vld [vmem:[%s2] sm:$0x1]
  %v33 = vlaneseq
  %v34 = vshrl.u32 %v33, 7
  %v35 = vsub.s32 0, %v34
  %v36 = vrot.slane %v31, %v35
  %v40 = vunpack.c.l.b16 %v27
  %v41 = vunpack.c.l.b16 %v28
  %v42 = vpack.c.b16 %v41, %v40
  %v45 = vunpack.c.l.b16 %v29
  %v46 = vunpack.c.l.b16 %v30
  %v47 = vpack.c.b16 %v46, %v45
  %vm49 = vcmask 130048
  %v51 = vsel %vm49, %v42, 0
  %53 = vmatprep.subr.bf16.mxu0 0
  %54 = vmatpush1.bf16.msra.mxu0 0
  %55 = vmatprep.subr.bf16.mxu0 0
  %56 = vmatpush1.bf16.msra.mxu0 0
  %57 = vmatprep.subr.bf16.mxu0 0
  %58 = vmatpush1.bf16.msra.mxu0 0
  %59 = vmatprep.subr.bf16.mxu0 0
  %60 = vmatpush1.bf16.msra.mxu0 0
  %61 = vmatprep.subr.bf16.mxu0 0
  %62 = vmatpush1.bf16.msra.mxu0 0
  %63 = vmatprep.subr.bf16.mxu0 0
  %64 = vmatpush1.bf16.msra.mxu0 0
  %65 = vmatprep.subr.bf16.mxu0 0
  %66 = vmatpush1.bf16.msra.mxu0 0
  %67 = vmatprep.subr.bf16.mxu0 0
  %68 = vmatpush1.bf16.msra.mxu0 %v47
  %69 = vmatprep.subr.bf16.mxu0 0
  %70 = vmatpush2.bf16.msra.mxu0 0
  %71 = vmatprep.subr.bf16.mxu0 0
  %72 = vmatpush2.bf16.msra.mxu0 0
  %73 = vmatprep.subr.bf16.mxu0 0
  %74 = vmatpush2.bf16.msra.mxu0 0
  %75 = vmatprep.subr.bf16.mxu0 0
  %76 = vmatpush2.bf16.msra.mxu0 0
  %77 = vmatprep.subr.bf16.mxu0 0
  %78 = vmatpush2.bf16.msra.mxu0 0
  %79 = vmatprep.subr.bf16.mxu0 0
  %80 = vmatpush2.bf16.msra.mxu0 0
  %81 = vmatprep.subr.bf16.mxu0 0
  %82 = vmatpush2.bf16.msra.mxu0 0
  %83 = vmatprep.subr.bf16.mxu0 0
  %84 = vmatpush2.bf16.msra.mxu0 0
  %85 = vmatprep.mubr.bf16.mxu0 0
  %86 = vmatmul.mubr.bf16.gmra.mxu0 %v51
  %v87 = vpop.f32.mrf.mxu0
  %v88 = vadd.f32 %v36, %v87
  %v89 = vpop.f32.mrf.mxu0
  %v90 = vpop.f32.mrf.mxu0
  %v91 = vadd.f32 %v36, %v90
  %v92 = vpop.f32.mrf.mxu0
  %93 = vdwg.mxu0
  %v94 = vmax.f32 %v88, 0.0
  %v95 = vmax.f32 %v91, 0.0
  %v96 = vpack.c.bf16 %v95, %v94
  %v97 = vld [vmem:[%s3] sm:$0xf]
  %v98 = vld [vmem:[%s3 + $0x4] sm:$0xf]
  %v99 = vld [vmem:[%s3 + $0x8] sm:$0xf]
  %v100 = vld [vmem:[%s3 + $0xc] sm:$0xf]
  %v101 = vld [vmem:[%s3 + $0x10] sm:$0xf]
  %v102 = vld [vmem:[%s3 + $0x14] sm:$0xf]
  %v103 = vld [vmem:[%s3 + $0x18] sm:$0xf]
  %v104 = vld [vmem:[%s3 + $0x1c] sm:$0xf]
  %v105 = vld [vmem:[%s3 + $0x20] sm:$0xf]
  %v106 = vld [vmem:[%s3 + $0x24] sm:$0xf]
  %v107 = vld [vmem:[%s3 + $0x28] sm:$0xf]
  %v108 = vld [vmem:[%s3 + $0x2c] sm:$0xf]
  %v109 = vld [vmem:[%s3 + $0x30] sm:$0xf]
  %v110 = vld [vmem:[%s3 + $0x34] sm:$0xf]
  %v111 = vld [vmem:[%s3 + $0x38] sm:$0xf]
  %v112 = vld [vmem:[%s3 + $0x3c] sm:$0xf]
  %v113 = vld [vmem:[%s4] sm:$0x1]
  %v115 = vlaneseq
  %v116 = vshrl.u32 %v115, 7
  %v117 = vsub.s32 0, %v116
  %v118 = vrot.slane %v113, %v117
  %v136 = vunpack.c.l.b16 %v97
  %v137 = vunpack.c.l.b16 %v98
  %v138 = vunpack.c.l.b16 %v99
  %v139 = vunpack.c.l.b16 %v100
  %v140 = vunpack.c.l.b16 %v101
  %v141 = vunpack.c.l.b16 %v102
  %v142 = vunpack.c.l.b16 %v103
  %v143 = vunpack.c.l.b16 %v104
  %v144 = vunpack.c.l.b16 %v105
  %v145 = vunpack.c.l.b16 %v106
  %v146 = vunpack.c.l.b16 %v107
  %v147 = vunpack.c.l.b16 %v108
  %v148 = vunpack.c.l.b16 %v109
  %v149 = vunpack.c.l.b16 %v110
  %v150 = vunpack.c.l.b16 %v111
  %v151 = vunpack.c.l.b16 %v112
  %v152 = vpack.c.b16 %v137, %v136
  %v153 = vpack.c.b16 %v139, %v138
  %v154 = vpack.c.b16 %v141, %v140
  %v155 = vpack.c.b16 %v143, %v142
  %v156 = vpack.c.b16 %v145, %v144
  %v157 = vpack.c.b16 %v147, %v146
  %v158 = vpack.c.b16 %v149, %v148
  %v159 = vpack.c.b16 %v151, %v150
  %168 = vmatprep.subr.bf16.mxu0 0
  %169 = vmatpush1.bf16.msra.mxu0 %v159
  %170 = vmatprep.subr.bf16.mxu0 0
  %171 = vmatpush1.bf16.msra.mxu0 %v158
  %172 = vmatprep.subr.bf16.mxu0 0
  %173 = vmatpush1.bf16.msra.mxu0 %v157
  %174 = vmatprep.subr.bf16.mxu0 0
  %175 = vmatpush1.bf16.msra.mxu0 %v156
  %176 = vmatprep.subr.bf16.mxu0 0
  %177 = vmatpush1.bf16.msra.mxu0 %v155
  %178 = vmatprep.subr.bf16.mxu0 0
  %179 = vmatpush1.bf16.msra.mxu0 %v154
  %180 = vmatprep.subr.bf16.mxu0 0
  %181 = vmatpush1.bf16.msra.mxu0 %v153
  %182 = vmatprep.subr.bf16.mxu0 0
  %183 = vmatpush1.bf16.msra.mxu0 %v152
  %184 = vmatprep.subr.bf16.mxu0 0
  %185 = vmatpush2.bf16.msra.mxu0 0
  %186 = vmatprep.subr.bf16.mxu0 0
  %187 = vmatpush2.bf16.msra.mxu0 0
  %188 = vmatprep.subr.bf16.mxu0 0
  %189 = vmatpush2.bf16.msra.mxu0 0
  %190 = vmatprep.subr.bf16.mxu0 0
  %191 = vmatpush2.bf16.msra.mxu0 0
  %192 = vmatprep.subr.bf16.mxu0 0
  %193 = vmatpush2.bf16.msra.mxu0 0
  %194 = vmatprep.subr.bf16.mxu0 0
  %195 = vmatpush2.bf16.msra.mxu0 0
  %196 = vmatprep.subr.bf16.mxu0 0
  %197 = vmatpush2.bf16.msra.mxu0 0
  %198 = vmatprep.subr.bf16.mxu0 0
  %199 = vmatpush2.bf16.msra.mxu0 0
  %200 = vmatprep.mubr.bf16.mxu0 0
  %201 = vmatmul.mubr.bf16.gmra.mxu0 %v96
  %v202 = vpop.f32.mrf.mxu0
  %v203 = vadd.f32 %v118, %v202
  %v204 = vpop.f32.mrf.mxu0
  %v205 = vpop.f32.mrf.mxu0
  %v206 = vadd.f32 %v118, %v205
  %v207 = vpop.f32.mrf.mxu0
  %208 = vdwg.mxu0
  %v209 = vmax.f32 %v203, 0.0
  %v210 = vmax.f32 %v206, 0.0
  %v211 = vpack.c.bf16 %v210, %v209
  %v212 = vld [vmem:[%s5] sm:$0xf]
  %v213 = vld [vmem:[%s5 + $0x4] sm:$0xf]
  %v214 = vld [vmem:[%s5 + $0x8] sm:$0xf]
  %v215 = vld [vmem:[%s5 + $0xc] sm:$0xf]
  %v216 = vld [vmem:[%s5 + $0x10] sm:$0xf]
  %v217 = vld [vmem:[%s5 + $0x14] sm:$0xf]
  %v218 = vld [vmem:[%s5 + $0x18] sm:$0xf]
  %v219 = vld [vmem:[%s5 + $0x1c] sm:$0xf]
  %v220 = vld [vmem:[%s5 + $0x20] sm:$0xf]
  %v221 = vld [vmem:[%s5 + $0x24] sm:$0xf]
  %v222 = vld [vmem:[%s5 + $0x28] sm:$0xf]
  %v223 = vld [vmem:[%s5 + $0x2c] sm:$0xf]
  %v224 = vld [vmem:[%s5 + $0x30] sm:$0xf]
  %v225 = vld [vmem:[%s5 + $0x34] sm:$0xf]
  %v226 = vld [vmem:[%s5 + $0x38] sm:$0xf]
  %v227 = vld [vmem:[%s5 + $0x3c] sm:$0xf]
  %v228 = vld [vmem:[%s6] sm:$0x1]
  %v230 = vlaneseq
  %v231 = vshrl.u32 %v230, 7
  %v232 = vsub.s32 0, %v231
  %v233 = vrot.slane %v228, %v232
  %v251 = vunpack.c.l.b16 %v212
  %v252 = vunpack.c.l.b16 %v213
  %v253 = vunpack.c.l.b16 %v214
  %v254 = vunpack.c.l.b16 %v215
  %v255 = vunpack.c.l.b16 %v216
  %v256 = vunpack.c.l.b16 %v217
  %v257 = vunpack.c.l.b16 %v218
  %v258 = vunpack.c.l.b16 %v219
  %v259 = vunpack.c.l.b16 %v220
  %v260 = vunpack.c.l.b16 %v221
  %v261 = vunpack.c.l.b16 %v222
  %v262 = vunpack.c.l.b16 %v223
  %v263 = vunpack.c.l.b16 %v224
  %v264 = vunpack.c.l.b16 %v225
  %v265 = vunpack.c.l.b16 %v226
  %v266 = vunpack.c.l.b16 %v227
  %v267 = vpack.c.b16 %v252, %v251
  %v268 = vpack.c.b16 %v254, %v253
  %v269 = vpack.c.b16 %v256, %v255
  %v270 = vpack.c.b16 %v258, %v257
  %v271 = vpack.c.b16 %v260, %v259
  %v272 = vpack.c.b16 %v262, %v261
  %v273 = vpack.c.b16 %v264, %v263
  %v274 = vpack.c.b16 %v266, %v265
  %283 = vmatprep.subr.bf16.mxu0 0
  %284 = vmatpush1.bf16.msra.mxu0 %v274
  %285 = vmatprep.subr.bf16.mxu0 0
  %286 = vmatpush1.bf16.msra.mxu0 %v273
  %287 = vmatprep.subr.bf16.mxu0 0
  %288 = vmatpush1.bf16.msra.mxu0 %v272
  %289 = vmatprep.subr.bf16.mxu0 0
  %290 = vmatpush1.bf16.msra.mxu0 %v271
  %291 = vmatprep.subr.bf16.mxu0 0
  %292 = vmatpush1.bf16.msra.mxu0 %v270
  %293 = vmatprep.subr.bf16.mxu0 0
  %294 = vmatpush1.bf16.msra.mxu0 %v269
  %295 = vmatprep.subr.bf16.mxu0 0
  %296 = vmatpush1.bf16.msra.mxu0 %v268
  %297 = vmatprep.subr.bf16.mxu0 0
  %298 = vmatpush1.bf16.msra.mxu0 %v267
  %299 = vmatprep.subr.bf16.mxu0 0
  %300 = vmatpush2.bf16.msra.mxu0 0
  %301 = vmatprep.subr.bf16.mxu0 0
  %302 = vmatpush2.bf16.msra.mxu0 0
  %303 = vmatprep.subr.bf16.mxu0 0
  %304 = vmatpush2.bf16.msra.mxu0 0
  %305 = vmatprep.subr.bf16.mxu0 0
  %306 = vmatpush2.bf16.msra.mxu0 0
  %307 = vmatprep.subr.bf16.mxu0 0
  %308 = vmatpush2.bf16.msra.mxu0 0
  %309 = vmatprep.subr.bf16.mxu0 0
  %310 = vmatpush2.bf16.msra.mxu0 0
  %311 = vmatprep.subr.bf16.mxu0 0
  %312 = vmatpush2.bf16.msra.mxu0 0
  %313 = vmatprep.subr.bf16.mxu0 0
  %314 = vmatpush2.bf16.msra.mxu0 0
  %315 = vmatprep.mubr.bf16.mxu0 0
  %316 = vmatmul.mubr.bf16.gmra.mxu0 %v211
  %v317 = vpop.f32.mrf.mxu0
  %v318 = vadd.f32 %v233, %v317
  %v319 = vpop.f32.mrf.mxu0
  %v320 = vpop.f32.mrf.mxu0
  %v321 = vadd.f32 %v233, %v320
  %v322 = vpop.f32.mrf.mxu0
  %323 = vdwg.mxu0
  %324 = vst [vmem:[%s7] sm:$0xff] %v318
  %325 = vst [vmem:[%s7 + $0x8] sm:$0xff] %v321
  // Predicated region
  $region30: #{mlp_forward.1} parent=0 // pred_check
    _
  $region31: #{mlp_forward.1} parent=0 // pred_check_branch
    %327 = sbr.rel (0) target = $region33
  $region32: #{mlp_forward.1} parent=0 // pred_region
    _
  $region33: #{mlp_forward.1} parent=0 // pred_fallthru
    _
  // Predicated region
  $region34: #{mlp_forward.1} parent=0 // pred_check
    _
  $region35: #{mlp_forward.1} parent=0 // pred_check_branch
    %329 = sbr.rel (0) target = $region37
  $region36: #{mlp_forward.1} parent=0 // pred_region
    _
  $region37: #{mlp_forward.1} parent=0 // pred_fallthru
    _

</llo_original>
